<compile_context>
chip_gen: v6e
topology: v6e:2x2x1
jax: 0.10.0
libtpu: 0.0.40
codegen_flags: <defaults>
</compile_context>

<pallas_src>
import jax
import jax.numpy as jnp
from jax.experimental import pallas as pl
from jax.experimental.pallas import tpu as pltpu

_LANE = 128


def _leaky_transfer_kernel(jr_ref, xx_ref, out_ref):
    # jr_ref: SMEM (1,) learnable jump_rate.  xx_ref/out_ref: (S, TB) VMEM tiles.
    jr = jr_ref[0]
    S = xx_ref.shape[0]

    # Scalar prep on the scalar unit (loop-invariant, essentially free).
    jps = jr / (S - 1.0)          # off-diagonal weight
    diag_w = 1.0 - jr             # diagonal weight

    xx = xx_ref[...]
    m = jnp.max(xx, axis=0, keepdims=True)        # (1, TB)  XLU sublane reduce
    p = jnp.exp(xx - m)                           # (S, TB)  EUP
    colsum = jnp.sum(p, axis=0, keepdims=True)    # (1, TB)  XLU
    # transfer @ p = jps*(colsum - p) + (1 - jr)*p   (all terms non-negative
    # for 0 <= jr <= 1; matches the reference's accumulation order).
    y = jps * (colsum - p) + diag_w * p           # (S, TB)  VPU
    out_ref[...] = jnp.log(y) + m


def _round_up(x, m):
    return ((x + m - 1) // m) * m


def leaky_transfer(jump_rate, xx, *, tb=None):
    """jump_rate: scalar float (learnable param); xx: (num_states, batch) f32 log-values."""
    S, B = xx.shape
    if S < 2:
        raise ValueError("LeakyTransfer requires num_states >= 2 (jump_rate/(S-1)).")
    jr = jnp.asarray(jump_rate, dtype=jnp.float32).reshape((1,))

    if tb is None:
        # Memory-bound: biggest lane-dense tile that keeps the pipelined
        # footprint (2 in-bufs + 2 out-bufs = 16*S*tb bytes) under ~8 MiB,
        # safe against v5e's 16 MiB scoped-VMEM default and v7x's 64 MiB
        # physical VMEM without touching vmem_limit_bytes.
        vmem_budget = 8 * 1024 * 1024
        tb = max(_LANE, (vmem_budget // (16 * S)) // _LANE * _LANE)
        # Never wider than the lane-rounded batch (no wasted DMA).
        tb = min(tb, _round_up(B, _LANE))
        # v7x megacore: guarantee >= 2 grid steps when there's enough work so
        # the "parallel" batch axis is sharded across both TensorCores.
        if B > 2 * _LANE:
            tb = min(tb, _round_up((B + 1) // 2, _LANE))
    tb = max(_LANE, _round_up(tb, _LANE))

    # No padding, no post-slice: cdiv grid + Pallas-bounded edge-block DMAs.
    # Compute is column-local, so undefined lanes in the overhanging tail tile
    # never contaminate valid columns and are never written back to HBM.
    grid = (pl.cdiv(B, tb),)

    return pl.pallas_call(
        _leaky_transfer_kernel,
        out_shape=jax.ShapeDtypeStruct((S, B), jnp.float32),
        grid=grid,
        in_specs=[
            pl.BlockSpec((1,), lambda j: (0,),
                         memory_space=pltpu.MemorySpace.SMEM),   # jump_rate scalar
            pl.BlockSpec((S, tb), lambda j: (0, j)),             # xx batch tile
        ],
        out_specs=pl.BlockSpec((S, tb), lambda j: (0, j)),
        compiler_params=pltpu.CompilerParams(
            dimension_semantics=("parallel",),   # megacore-shard batch tiles on v7x
        ),
    )(jr, xx)


def _reference(jump_rate, xx):
    S = xx.shape[0]
    jps = jump_rate / (S - 1.0)
    transfer = jps * jnp.ones((S, S), jnp.float32)
    transfer -= jps * jnp.eye(S, dtype=jnp.float32)
    transfer += (1.0 - jump_rate) * jnp.eye(S, dtype=jnp.float32)
    m = jnp.max(xx, axis=0, keepdims=True)
    return jnp.log(transfer @ jnp.exp(xx - m)) + m


if __name__ == "__main__":
    jump_rate = 0.1          # deterministic "parameter" init (nn.Parameter(jump_rate))
    num_states, batch = 8, 16

    key = jax.random.PRNGKey(0)
    k1, k2 = jax.random.split(key)

    # xx: log-domain inputs, shape (num_states, batch). Single ragged tile path
    # (B=16 < lane width, no wrapper-side padding).
    xx = jax.random.normal(k1, (num_states, batch), dtype=jnp.float32)
    out = jax.block_until_ready(leaky_transfer(jump_rate, xx))
    ref = _reference(jnp.float32(jump_rate), xx)
    assert out.shape == (num_states, batch)
    assert jnp.allclose(out, ref, atol=1e-5, rtol=1e-5), "mismatch (S=8, B=16)"

    # Multi-tile grid with a ragged last block: B=300, tb=128 -> 3 grid steps.
    xx2 = jax.random.normal(k2, (num_states, 300), dtype=jnp.float32)
    out2 = jax.block_until_ready(leaky_transfer(jump_rate, xx2, tb=128))
    ref2 = _reference(jnp.float32(jump_rate), xx2)
    assert out2.shape == (num_states, 300)
    assert jnp.allclose(out2, ref2, atol=1e-5, rtol=1e-5), "mismatch (S=8, B=300)"

    # Larger jump_rate to exercise the better-conditioned grouping.
    out3 = jax.block_until_ready(leaky_transfer(0.95, xx2))
    ref3 = _reference(jnp.float32(0.95), xx2)
    assert jnp.allclose(out3, ref3, atol=1e-5, rtol=1e-5), "mismatch (jr=0.95)"

    print("KERNEL_OK")
</pallas_src>

<mosaic_0001>
module attributes {stable_mosaic.version = 11 : i64} {
  func.func @_leaky_transfer_kernel(%arg0: i32, %arg1: memref<1xf32, #tpu.memory_space<smem>>, %arg2: memref<8x128xf32, #tpu.memory_space<vmem>>, %arg3: memref<8x128xf32, #tpu.memory_space<vmem>>) attributes {dimension_semantics = [#tpu.dimension_semantics<parallel>], iteration_bounds = array<i64: 1>, scalar_prefetch = 0 : i64, scratch_operands = 0 : i64, tpu.core_type = #tpu.core_type<tc>, window_params = [{transform_indices = @transform_0, window_bounds = array<i64: 1>}, {transform_indices = @transform_1, window_bounds = array<i64: 8, 128>}, {transform_indices = @transform_2, window_bounds = array<i64: 8, 128>}]} {
    %c0 = arith.constant 0 : index
    %0 = memref.load %arg1[%c0] : memref<1xf32, #tpu.memory_space<smem>>
    %cst = arith.constant 7.000000e+00 : f32
    %1 = arith.divf %0, %cst : f32
    %cst_0 = arith.constant 1.000000e+00 : f32
    %2 = arith.subf %cst_0, %0 : f32
    %c0_1 = arith.constant 0 : index
    %c0_2 = arith.constant 0 : index
    %3 = vector.load %arg2[%c0_1, %c0_2] : memref<8x128xf32, #tpu.memory_space<vmem>>, vector<8x128xf32>
    %cst_3 = arith.constant dense<0xFF800000> : vector<128xf32>
    %4 = vector.multi_reduction <maximumf>, %3, %cst_3 [0] : vector<8x128xf32> to vector<128xf32>
    %5 = vector.shape_cast %4 : vector<128xf32> to vector<1x128xf32>
    %6 = vector.broadcast %5 : vector<1x128xf32> to vector<8x128xf32>
    %7 = arith.subf %3, %6 : vector<8x128xf32>
    %8 = math.exp %7 : vector<8x128xf32>
    %cst_4 = arith.constant dense<0.000000e+00> : vector<128xf32>
    %9 = vector.multi_reduction <add>, %8, %cst_4 [0] : vector<8x128xf32> to vector<128xf32>
    %10 = vector.shape_cast %9 : vector<128xf32> to vector<1x128xf32>
    %11 = vector.broadcast %10 : vector<1x128xf32> to vector<8x128xf32>
    %12 = arith.subf %11, %8 : vector<8x128xf32>
    %13 = vector.broadcast %1 : f32 to vector<8x128xf32>
    %14 = arith.mulf %13, %12 : vector<8x128xf32>
    %15 = vector.broadcast %2 : f32 to vector<8x128xf32>
    %16 = arith.mulf %15, %8 : vector<8x128xf32>
    %17 = arith.addf %14, %16 : vector<8x128xf32>
    %18 = math.log %17 : vector<8x128xf32>
    %19 = vector.broadcast %5 : vector<1x128xf32> to vector<8x128xf32>
    %20 = arith.addf %18, %19 : vector<8x128xf32>
    %c0_5 = arith.constant 0 : index
    %c0_6 = arith.constant 0 : index
    %21 = vector.load %arg3[%c0_5, %c0_6] : memref<8x128xf32, #tpu.memory_space<vmem>>, vector<8x128xf32>
    tpu.vector_store %arg3[%c0_5, %c0_6], %20 {strides = array<i32>} : memref<8x128xf32, #tpu.memory_space<vmem>>, vector<8x128xf32>,
    return
  }
  func.func @transform_0(%arg0: i32) -> i32 {
    %c0_i32 = arith.constant 0 : i32
    %c0_i32_0 = arith.constant 0 : i32
    return %c0_i32 : i32
  }
  func.func @transform_1(%arg0: i32) -> (i32, i32) {
    %c0_i32 = arith.constant 0 : i32
    %c0_i32_0 = arith.constant 0 : i32
    return %c0_i32, %arg0 : i32, i32
  }
  func.func @transform_2(%arg0: i32) -> (i32, i32) {
    %c0_i32 = arith.constant 0 : i32
    %c0_i32_0 = arith.constant 0 : i32
    return %c0_i32, %arg0 : i32, i32
  }
}

</mosaic_0001>

<llo_original>
// kernel: tpu_custom_call.1
$region0: #{tpu_custom_call.1}
  #allocation0 [shape = 'u32[]', space=smem, size = 0x4, offset = 0x4, fixed_abs, tag = 'smem constant byte address 0x4 - core index']
  #allocation1 [shape = 'u32[144,128]{1,0:T(1,128)}', space=vmem, size = 0x12000, scoped, tag = 'internal scratch']
  #allocation2 [shape = 'f32[1]{0:T(128)S(6)}', space=smem, size = 0x200, scoped, tag = 'scoped memory for tpu_custom_call.1']
  %s0 = inlined_call_operand.<no memory space> [shape: f32[1], index: 0, kind: input, shape index: {}]
  %s1 = inlined_call_operand.hbm [shape: f32[8,16], index: 1, kind: input, shape index: {}]
  %s2 = inlined_call_operand.hbm [shape: f32[8,16], index: 2, kind: output, shape index: {}]
  %s3 = sld [smem:[#allocation0]]
  $region22: #{tpu_custom_call.1} parent=0
    _
  %s5 = ssub.s32 1, %s3
  %s6 = scalar_select 0, %s5, %s3
  %7 = sst [smem:[#allocation2]] %s0
  $region1: #{tpu_custom_call.1} parent=0
    #allocation3 [shape = 'u8[4096]{0}', space=vmem, size = 0x1000, scoped, tag = 'input window, operand 1, single buffered']
    #allocation4 [shape = 's32[1]{0}', space=sflag, size = 0x4, scoped, tag = 'scoped memory for tpu_custom_call.1']
    #allocation5 [shape = 's32[1]{0}', space=sflag, size = 0x4, scoped, tag = 'scoped memory for tpu_custom_call.1']
    #allocation6 [shape = 'u8[4096]{0}', space=vmem, size = 0x1000, scoped, tag = 'output window, operand 0, single buffered']
    %8 = vsyncpa [#allocation4], 0
    %9 = vsyncpa [#allocation5], 0
    // Predicated region
    $region2: #{tpu_custom_call.1} parent=1 // pred_check
      _
    $region3: #{tpu_custom_call.1} parent=1 // pred_check_branch
      %11 = sbr.rel (0) target = $region5
    $region4: #{tpu_custom_call.1} parent=1 // pred_region
      _
    $region5: #{tpu_custom_call.1} parent=1 // pred_fallthru
      _
    // Predicated region
    $region6: #{tpu_custom_call.1} parent=1 // pred_check
      _
    $region7: #{tpu_custom_call.1} parent=1 // pred_check_branch
      %13 = sbr.rel (0) target = $region9
    $region8: #{tpu_custom_call.1} parent=1 // pred_region
      %s15 = ssub.s32 128, 128
      %16 = vsyncadd [#allocation4], %s15
      %s18 = sshll.u32 [#allocation3], 4
      %s19 = int_to_ptr.vmem [resolvable:$true] %s18
      %21 = dma.hbm_to_vmem [thread:$0]  %s1, 128, %s19, [#allocation4]
    $region9: #{tpu_custom_call.1} parent=1 // pred_fallthru
      _
    // Predicated region
    $region10: #{tpu_custom_call.1} parent=1 // pred_check
      _
    $region11: #{tpu_custom_call.1} parent=1 // pred_check_branch
      %23 = sbr.rel (0) target = $region13
    $region12: #{tpu_custom_call.1} parent=1 // pred_region
      %24 = dma.done [#allocation4], 128
    $region13: #{tpu_custom_call.1} parent=1 // pred_fallthru
      _
    %s25 = sld [smem:[#allocation2]]
    %v26 = vrcp.pop 7.0
    %s27 = vtos %v26
    %s28 = smul.f32 %s25, %s27
    %s29 = ssub.f32 1.0, %s25
    %v30 = vld [vmem:[#allocation3] sm:$0xff]
    %v31 = vrot.slane %v30, 4
    %v32 = vmax.f32 %v30, %v31
    %v33 = vrot.slane %v32, 2
    %v34 = vmax.f32 %v32, %v33
    %v35 = vrot.slane %v34, 1
    %v36 = vmax.f32 %v34, %v35
    %v37 = vsub.f32 %v30, %v36
    %v38 = vmul.f32 %v37, 1.442695
    %v39 = vpow.pop %v38
    %v40 = vrot.slane %v39, 4
    %v41 = vadd.f32 %v39, %v40
    %v42 = vrot.slane %v41, 2
    %v43 = vadd.f32 %v41, %v42
    %v44 = vrot.slane %v43, 1
    %v45 = vadd.f32 %v43, %v44
    %v46 = vsub.f32 %v45, %v39
    %v47 = vstv %s28
    %v48 = vmul.f32 %v47, %v46
    %v49 = vstv %s29
    %v50 = vmul.f32 %v49, %v39
    %v51 = vadd.f32 %v48, %v50
    %v52 = vlog2.pop %v51
    %v53 = vmul.f32 %v52, 0.6931472
    %v54 = vadd.f32 %v53, %v36
    %55 = vst [vmem:[#allocation6] sm:$0xff] %v54
    // Predicated region
    $region14: #{tpu_custom_call.1} parent=1 // pred_check
      _
    $region15: #{tpu_custom_call.1} parent=1 // pred_check_branch
      %57 = sbr.rel (0) target = $region17
    $region16: #{tpu_custom_call.1} parent=1 // pred_region
      %s59 = ssub.s32 128, 128
      %60 = vsyncadd [#allocation5], %s59
      %s62 = sshll.u32 [#allocation6], 4
      %s63 = int_to_ptr.vmem [resolvable:$true] %s62
      %65 = dma.vmem_to_hbm [thread:$0]  %s63, 128, %s2, [#allocation5]
    $region17: #{tpu_custom_call.1} parent=1 // pred_fallthru
      _
    // Predicated region
    $region18: #{tpu_custom_call.1} parent=1 // pred_check
      _
    $region19: #{tpu_custom_call.1} parent=1 // pred_check_branch
      %67 = sbr.rel (0) target = $region21
    $region20: #{tpu_custom_call.1} parent=1 // pred_region
      %68 = dma.done [#allocation5], 128
    $region21: #{tpu_custom_call.1} parent=1 // pred_fallthru
      _
    %69 = vsyncpa [#allocation4], 1
    %70 = vsyncpa [#allocation5], 1

</llo_original>
